<compile_context>
chip_gen: v6e
topology: v6e:2x2x1
jax: 0.10.0
libtpu: 0.0.40
codegen_flags: <defaults>
</compile_context>

<pallas_src>
import functools

import jax
import jax.numpy as jnp
from jax.experimental import pallas as pl
from jax.experimental.pallas import tpu as pltpu


# ----------------------------------------------------------------------------
# In-kernel helpers (all f32 elementwise math: safe on v5e's f32-only VPU/EUP)
# ----------------------------------------------------------------------------
def _gelu(x):
    # tanh-approximate GELU (see TODO above)
    return 0.5 * x * (1.0 + jnp.tanh(0.7978845608028654 * (x + 0.044715 * x * x * x)))


def _ln(x, g, b, eps=1e-5):
    mu = jnp.mean(x, axis=-1, keepdims=True)
    var = jnp.mean((x - mu) * (x - mu), axis=-1, keepdims=True)
    return (x - mu) * jax.lax.rsqrt(var + eps) * g + b


def _mm(a, w, b, mxu_dtype):
    """Matmul with configurable MXU operand dtype, f32 accumulation, + bias."""
    return jnp.dot(a.astype(mxu_dtype), w.astype(mxu_dtype),
                   preferred_element_type=jnp.float32) + b.astype(jnp.float32)


# ----------------------------------------------------------------------------
# Kernel 1: positional grouped Conv1d (+GELU) + residual (+ optional post-LN)
# One batch element per grid step; halo handled in VMEM, single long-contraction
# matmul over the K stacked windows.
# ----------------------------------------------------------------------------
def _conv_pos_residual_kernel(x_ref, w_ref, b_ref, ln_g_ref, ln_b_ref, o_ref, *,
                              kernel_size, normalize_before, mxu_dtype):
    T, E = x_ref.shape[1], x_ref.shape[2]
    pad = kernel_size // 2
    x = x_ref[0].astype(jnp.float32)                            # (T, E)

    zeros = jnp.zeros((pad, E), jnp.float32)
    xp = jnp.concatenate([zeros, x, zeros], axis=0)             # (T + 2*pad, E)
    # Stack the K shifted windows along the contraction axis -> one MXU push.
    win = jnp.concatenate([xp[k:k + T, :] for k in range(kernel_size)], axis=-1)  # (T, K*E)
    conv = _mm(win, w_ref[...], b_ref[...], mxu_dtype)          # (T, E)

    y = x + _gelu(conv)                                         # fused residual
    if not normalize_before:
        y = _ln(y, ln_g_ref[...], ln_b_ref[...])                # fused top-level LN
    o_ref[0] = y.astype(o_ref.dtype)


def conv_pos_residual(x, w_cat, b, ln_g, ln_b, kernel_size, normalize_before, mxu_dtype):
    """x: (B, T, E); w_cat: (K*E, E) stacked per-tap block-diag weights."""
    B, T, E = x.shape
    kern = functools.partial(_conv_pos_residual_kernel, kernel_size=kernel_size,
                             normalize_before=normalize_before, mxu_dtype=mxu_dtype)
    return pl.pallas_call(
        kern,
        out_shape=jax.ShapeDtypeStruct((B, T, E), x.dtype),
        grid=(B,),
        in_specs=[
            pl.BlockSpec((1, T, E), lambda i: (i, 0, 0)),
            pl.BlockSpec(w_cat.shape, lambda i: (0, 0)),
            pl.BlockSpec((1, E), lambda i: (0, 0)),
            pl.BlockSpec((1, E), lambda i: (0, 0)),
            pl.BlockSpec((1, E), lambda i: (0, 0)),
        ],
        out_specs=pl.BlockSpec((1, T, E), lambda i: (i, 0, 0)),
        compiler_params=pltpu.CompilerParams(dimension_semantics=("parallel",)),
    )(x, w_cat, b.reshape(1, E), ln_g.reshape(1, E), ln_b.reshape(1, E))


# ----------------------------------------------------------------------------
# Kernel 2: one fully fused TransformerEncoderLayer per batch element.
#   pre/post-LN + QKV (fused weight) + MHA + out-proj + residual + FFN + residual
# ----------------------------------------------------------------------------
def _encoder_layer_kernel(x_ref, wqkv_ref, bqkv_ref, wo_ref, bo_ref,
                          w1_ref, b1_ref, w2_ref, b2_ref,
                          ln1_g_ref, ln1_b_ref, ln2_g_ref, ln2_b_ref,
                          o_ref, *, num_heads, normalize_before, mxu_dtype):
    T, E = x_ref.shape[1], x_ref.shape[2]
    hd = E // num_heads
    scale = float(hd) ** -0.5
    x = x_ref[0].astype(jnp.float32)                            # (T, E)

    # ---------------- self-attention block ----------------
    attn_in = _ln(x, ln1_g_ref[...], ln1_b_ref[...]) if normalize_before else x
    qkv = _mm(attn_in, wqkv_ref[...], bqkv_ref[...], mxu_dtype)  # (T, 3E)
    q = qkv[:, :E] * scale
    k = qkv[:, E:2 * E]
    v = qkv[:, 2 * E:]

    # Per-head attention; everything stays in VMEM (no head-dim-last HBM stores).
    outs = []
    for h_i in range(num_heads):
        sl = slice(h_i * hd, (h_i + 1) * hd)
        qh, kh, vh = q[:, sl], k[:, sl], v[:, sl]
        s = jax.lax.dot_general(qh, kh, (((1,), (1,)), ((), ())),
                                preferred_element_type=jnp.float32)   # (T, T)
        m = jnp.max(s, axis=-1, keepdims=True)
        p = jnp.exp(s - m)
        denom = jnp.sum(p, axis=-1, keepdims=True)
        p = p * pl.reciprocal(denom, approx=True)                     # EUP divide
        outs.append(jnp.dot(p, vh, preferred_element_type=jnp.float32))
    attn = jnp.concatenate(outs, axis=-1)                             # (T, E)

    x = x + _mm(attn, wo_ref[...], bo_ref[...], mxu_dtype)            # fused residual
    if not normalize_before:
        x = _ln(x, ln1_g_ref[...], ln1_b_ref[...])

    # ---------------- feed-forward block ----------------
    ffn_in = _ln(x, ln2_g_ref[...], ln2_b_ref[...]) if normalize_before else x
    h = _gelu(_mm(ffn_in, w1_ref[...], b1_ref[...], mxu_dtype))       # (T, F)
    x = x + _mm(h, w2_ref[...], b2_ref[...], mxu_dtype)               # fused residual
    if not normalize_before:
        x = _ln(x, ln2_g_ref[...], ln2_b_ref[...])

    o_ref[0] = x.astype(o_ref.dtype)


def encoder_layer(x, p, num_heads, normalize_before, mxu_dtype):
    B, T, E = x.shape
    F = p["w1"].shape[1]
    kern = functools.partial(_encoder_layer_kernel, num_heads=num_heads,
                             normalize_before=normalize_before, mxu_dtype=mxu_dtype)

    def full2(shape):
        return pl.BlockSpec(shape, lambda i: (0, 0))

    return pl.pallas_call(
        kern,
        out_shape=jax.ShapeDtypeStruct((B, T, E), x.dtype),
        grid=(B,),
        in_specs=[
            pl.BlockSpec((1, T, E), lambda i: (i, 0, 0)),
            full2((E, 3 * E)), full2((1, 3 * E)),
            full2((E, E)), full2((1, E)),
            full2((E, F)), full2((1, F)),
            full2((F, E)), full2((1, E)),
            full2((1, E)), full2((1, E)),
            full2((1, E)), full2((1, E)),
        ],
        out_specs=pl.BlockSpec((1, T, E), lambda i: (i, 0, 0)),
        compiler_params=pltpu.CompilerParams(dimension_semantics=("parallel",)),
    )(x, p["wqkv"], p["bqkv"].reshape(1, 3 * E), p["wo"], p["bo"].reshape(1, E),
      p["w1"], p["b1"].reshape(1, F), p["w2"], p["b2"].reshape(1, E),
      p["ln1_g"].reshape(1, E), p["ln1_b"].reshape(1, E),
      p["ln2_g"].reshape(1, E), p["ln2_b"].reshape(1, E))


# ----------------------------------------------------------------------------
# Kernel 3: fused head = (optional final LN) + mean-pool over time + classifier
# Classifier output padded to a 128-lane slab for unmasked stores.
# ----------------------------------------------------------------------------
def _head_kernel(x_ref, ln_g_ref, ln_b_ref, w1_ref, b1_ref, w2_ref, b2_ref, o_ref, *,
                 normalize_before, mxu_dtype):
    x = x_ref[0].astype(jnp.float32)                            # (T, E)
    if normalize_before:
        x = _ln(x, ln_g_ref[...], ln_b_ref[...])
    pooled = jnp.mean(x, axis=0, keepdims=True)                 # (1, E)
    h = _gelu(_mm(pooled, w1_ref[...], b1_ref[...], mxu_dtype))  # (1, E)
    pred = _mm(h, w2_ref[...], b2_ref[...], mxu_dtype)          # (1, Cp) lane-dense
    o_ref[0] = pred.astype(o_ref.dtype)


def head(x, ln_g, ln_b, w1, b1, w2_pad, b2_pad, normalize_before, mxu_dtype):
    B, T, E = x.shape
    Cp = w2_pad.shape[1]
    kern = functools.partial(_head_kernel, normalize_before=normalize_before,
                             mxu_dtype=mxu_dtype)
    out = pl.pallas_call(
        kern,
        out_shape=jax.ShapeDtypeStruct((B, 1, Cp), x.dtype),
        grid=(B,),
        in_specs=[
            pl.BlockSpec((1, T, E), lambda i: (i, 0, 0)),
            pl.BlockSpec((1, E), lambda i: (0, 0)),
            pl.BlockSpec((1, E), lambda i: (0, 0)),
            pl.BlockSpec((E, E), lambda i: (0, 0)),
            pl.BlockSpec((1, E), lambda i: (0, 0)),
            pl.BlockSpec((E, Cp), lambda i: (0, 0)),
            pl.BlockSpec((1, Cp), lambda i: (0, 0)),
        ],
        out_specs=pl.BlockSpec((1, 1, Cp), lambda i: (i, 0, 0)),
        compiler_params=pltpu.CompilerParams(dimension_semantics=("parallel",)),
    )(x, ln_g.reshape(1, E), ln_b.reshape(1, E),
      w1, b1.reshape(1, E), w2_pad, b2_pad.reshape(1, Cp))
    return out[:, 0, :]                                         # (B, Cp)


# ----------------------------------------------------------------------------
# Host-side model assembly (three fused pallas_calls per forward + layer loop)
# ----------------------------------------------------------------------------
def transformer_forward(params, x, args):
    """x: (B, T, E) float32; returns logits (B, num_classes)."""
    nb = args["normalize_before"]
    mxu = args.get("mxu_dtype", jnp.float32)

    # extract_features: positional conv (+GELU) added residually (+post-LN if needed)
    x = conv_pos_residual(x, params["pos_conv_w"], params["pos_conv_b"],
                          params["ln_g"], params["ln_b"],
                          args["conv_pos"], nb, mxu)
    for lp in params["layers"]:
        x = encoder_layer(x, lp, args["num_heads"], nb, mxu)

    pred_padded = head(x, params["ln_g"], params["ln_b"],
                       params["cls_w1"], params["cls_b1"],
                       params["cls_w2_pad"], params["cls_b2_pad"], nb, mxu)
    return pred_padded[:, :args["num_classes"]]


# ----------------------------------------------------------------------------
# Deterministic parameter init (synthetic; shapes follow the module __init__)
# ----------------------------------------------------------------------------
def init_params(key, args):
    E = args["embed_dim"]
    F = args["ffn_embed_dim"]
    K = args["conv_pos"]
    G = args["conv_pos_groups"]
    C = args["num_classes"]
    L = args["num_encoder_layers"]
    cg = E // G
    Cp = max(128, ((C + 127) // 128) * 128)   # lane-dense classifier output

    keys = iter(jax.random.split(key, 256))

    def w(shape, scale=0.02):
        return (scale * jax.random.normal(next(keys), shape)).astype(jnp.float32)

    # Grouped Conv1d weight (E_out, cg_in, K) -> per-tap block-diag (K, E, E)
    # -> stacked (K*E, E) so the kernel can do one long-contraction matmul.
    conv_w = w((E, cg, K))
    Wg = conv_w.reshape(G, cg, cg, K)          # (group, out_local, in_local, tap)
    taps = []
    for k in range(K):
        blocks = [Wg[g, :, :, k].T for g in range(G)]   # (in_local, out_local)
        taps.append(jax.scipy.linalg.block_diag(*blocks))
    pos_conv_w = jnp.stack(taps, axis=0).reshape(K * E, E).astype(jnp.float32)

    cls_w2 = w((E, C))
    cls_b2 = jnp.zeros((C,), jnp.float32)
    cls_w2_pad = jnp.zeros((E, Cp), jnp.float32).at[:, :C].set(cls_w2)
    cls_b2_pad = jnp.zeros((Cp,), jnp.float32).at[:C].set(cls_b2)

    params = dict(
        pos_conv_w=pos_conv_w,
        pos_conv_b=w((E,)),
        ln_g=jnp.ones((E,), jnp.float32),
        ln_b=jnp.zeros((E,), jnp.float32),
        cls_w1=w((E, E)), cls_b1=jnp.zeros((E,), jnp.float32),
        cls_w2_pad=cls_w2_pad, cls_b2_pad=cls_b2_pad,
    )
    layers = []
    for _ in range(L):
        layers.append(dict(
            wqkv=w((E, 3 * E)), bqkv=jnp.zeros((3 * E,), jnp.float32),  # [Wq|Wk|Wv]
            wo=w((E, E)), bo=jnp.zeros((E,), jnp.float32),
            w1=w((E, F)), b1=jnp.zeros((F,), jnp.float32),
            w2=w((F, E)), b2=jnp.zeros((E,), jnp.float32),
            ln1_g=jnp.ones((E,), jnp.float32), ln1_b=jnp.zeros((E,), jnp.float32),
            ln2_g=jnp.ones((E,), jnp.float32), ln2_b=jnp.zeros((E,), jnp.float32),
        ))
    params["layers"] = layers
    return params


# ----------------------------------------------------------------------------
if __name__ == "__main__":
    args = dict(
        embed_dim=32,
        ffn_embed_dim=64,
        num_heads=4,
        num_encoder_layers=2,
        conv_pos=5,
        conv_pos_groups=4,
        num_classes=10,
        normalize_before=True,
        mxu_dtype=jnp.float32,   # set to jnp.bfloat16 on v6e/v7x for MXU peak
    )

    key = jax.random.PRNGKey(0)
    pkey, xkey = jax.random.split(key)
    params = init_params(pkey, args)

    B, T = 2, 8
    x = jax.random.normal(xkey, (B, T, args["embed_dim"]), dtype=jnp.float32)

    pred = transformer_forward(params, x, args)   # pad_mask=None path
    pred = jax.block_until_ready(pred)

    assert pred.shape == (B, args["num_classes"])
    assert bool(jnp.all(jnp.isfinite(pred)))
    print("KERNEL_OK")
</pallas_src>

<mosaic_0001>
module attributes {stable_mosaic.version = 11 : i64} {
  func.func @_conv_pos_residual_kernel(%arg0: i32, %arg1: memref<1x8x32xf32, #tpu.memory_space<vmem>>, %arg2: memref<160x32xf32, #tpu.memory_space<vmem>>, %arg3: memref<1x32xf32, #tpu.memory_space<vmem>>, %arg4: memref<1x32xf32, #tpu.memory_space<vmem>>, %arg5: memref<1x32xf32, #tpu.memory_space<vmem>>, %arg6: memref<1x8x32xf32, #tpu.memory_space<vmem>>) attributes {dimension_semantics = [#tpu.dimension_semantics<parallel>], iteration_bounds = array<i64: 2>, scalar_prefetch = 0 : i64, scratch_operands = 0 : i64, tpu.core_type = #tpu.core_type<tc>, window_params = [{transform_indices = @transform_0, window_bounds = array<i64: 1, 8, 32>}, {pipeline_mode = #tpu.pipeline_mode<synchronous>, transform_indices = @transform_1, window_bounds = array<i64: 160, 32>}, {pipeline_mode = #tpu.pipeline_mode<synchronous>, transform_indices = @transform_2, window_bounds = array<i64: 1, 32>}, {pipeline_mode = #tpu.pipeline_mode<synchronous>, transform_indices = @transform_3, window_bounds = array<i64: 1, 32>}, {pipeline_mode = #tpu.pipeline_mode<synchronous>, transform_indices = @transform_4, window_bounds = array<i64: 1, 32>}, {transform_indices = @transform_5, window_bounds = array<i64: 1, 8, 32>}]} {
    %c0 = arith.constant 0 : index
    %c0_0 = arith.constant 0 : index
    %c0_1 = arith.constant 0 : index
    %0 = vector.load %arg1[%c0, %c0_0, %c0_1] : memref<1x8x32xf32, #tpu.memory_space<vmem>>, vector<1x8x32xf32>
    %1 = vector.shape_cast %0 : vector<1x8x32xf32> to vector<8x32xf32>
    %cst = arith.constant 0.000000e+00 : f32
    %2 = vector.broadcast %cst : f32 to vector<2x32xf32>
    %3 = tpu.concatenate %2, %1, %2 in 0 : vector<2x32xf32>, vector<8x32xf32>, vector<2x32xf32> -> vector<12x32xf32>
    %4 = vector.extract_strided_slice %3 {offsets = [0, 0], sizes = [8, 32], strides = [1, 1]} : vector<12x32xf32> to vector<8x32xf32>
    %5 = vector.extract_strided_slice %3 {offsets = [1, 0], sizes = [8, 32], strides = [1, 1]} : vector<12x32xf32> to vector<8x32xf32>
    %6 = vector.extract_strided_slice %3 {offsets = [2, 0], sizes = [8, 32], strides = [1, 1]} : vector<12x32xf32> to vector<8x32xf32>
    %7 = vector.extract_strided_slice %3 {offsets = [3, 0], sizes = [8, 32], strides = [1, 1]} : vector<12x32xf32> to vector<8x32xf32>
    %8 = vector.extract_strided_slice %3 {offsets = [4, 0], sizes = [8, 32], strides = [1, 1]} : vector<12x32xf32> to vector<8x32xf32>
    %9 = tpu.concatenate %4, %5, %6, %7, %8 in 1 : vector<8x32xf32>, vector<8x32xf32>, vector<8x32xf32>, vector<8x32xf32>, vector<8x32xf32> -> vector<8x160xf32>
    %c0_2 = arith.constant 0 : index
    %c0_3 = arith.constant 0 : index
    %10 = vector.load %arg2[%c0_2, %c0_3] : memref<160x32xf32, #tpu.memory_space<vmem>>, vector<160x32xf32>
    %c0_4 = arith.constant 0 : index
    %c0_5 = arith.constant 0 : index
    %11 = vector.load %arg3[%c0_4, %c0_5] : memref<1x32xf32, #tpu.memory_space<vmem>>, vector<1x32xf32>
    %cst_6 = arith.constant dense<0.000000e+00> : vector<8x32xf32>
    %12 = tpu.matmul %9, %10, %cst_6 {dimension_numbers = #tpu.dot_dimension_numbers<[1], [0], [0], [1], [0, 0, 1, 1], [], []>} : vector<8x160xf32>, vector<160x32xf32>, vector<8x32xf32> -> vector<8x32xf32>
    %13 = vector.broadcast %11 : vector<1x32xf32> to vector<8x32xf32>
    %14 = arith.addf %12, %13 : vector<8x32xf32>
    %cst_7 = arith.constant 5.000000e-01 : f32
    %15 = vector.broadcast %cst_7 : f32 to vector<8x32xf32>
    %16 = arith.mulf %15, %14 : vector<8x32xf32>
    %cst_8 = arith.constant 4.471500e-02 : f32
    %17 = vector.broadcast %cst_8 : f32 to vector<8x32xf32>
    %18 = arith.mulf %17, %14 : vector<8x32xf32>
    %19 = arith.mulf %18, %14 : vector<8x32xf32>
    %20 = arith.mulf %19, %14 : vector<8x32xf32>
    %21 = arith.addf %14, %20 : vector<8x32xf32>
    %cst_9 = arith.constant 0.797884583 : f32
    %22 = vector.broadcast %cst_9 : f32 to vector<8x32xf32>
    %23 = arith.mulf %22, %21 : vector<8x32xf32>
    %24 = math.tanh %23 : vector<8x32xf32>
    %cst_10 = arith.constant 1.000000e+00 : f32
    %25 = vector.broadcast %cst_10 : f32 to vector<8x32xf32>
    %26 = arith.addf %25, %24 : vector<8x32xf32>
    %27 = arith.mulf %16, %26 : vector<8x32xf32>
    %28 = arith.addf %1, %27 : vector<8x32xf32>
    %c0_11 = arith.constant 0 : index
    %c0_12 = arith.constant 0 : index
    %c0_13 = arith.constant 0 : index
    %29 = vector.load %arg6[%c0_11, %c0_12, %c0_13] : memref<1x8x32xf32, #tpu.memory_space<vmem>>, vector<1x8x32xf32>
    %30 = vector.shape_cast %29 : vector<1x8x32xf32> to vector<8x32xf32>
    %31 = vector.shape_cast %28 : vector<8x32xf32> to vector<1x8x32xf32>
    tpu.vector_store %arg6[%c0_11, %c0_12, %c0_13], %31 {strides = array<i32>} : memref<1x8x32xf32, #tpu.memory_space<vmem>>, vector<1x8x32xf32>,
    return
  }
  func.func @transform_0(%arg0: i32) -> (i32, i32, i32) {
    %c0_i32 = arith.constant 0 : i32
    %c0_i32_0 = arith.constant 0 : i32
    %c0_i32_1 = arith.constant 0 : i32
    return %arg0, %c0_i32, %c0_i32_0 : i32, i32, i32
  }
  func.func @transform_1(%arg0: i32) -> (i32, i32) {
    %c0_i32 = arith.constant 0 : i32
    %c0_i32_0 = arith.constant 0 : i32
    %c0_i32_1 = arith.constant 0 : i32
    return %c0_i32, %c0_i32_0 : i32, i32
  }
  func.func @transform_2(%arg0: i32) -> (i32, i32) {
    %c0_i32 = arith.constant 0 : i32
    %c0_i32_0 = arith.constant 0 : i32
    %c0_i32_1 = arith.constant 0 : i32
    return %c0_i32, %c0_i32_0 : i32, i32
  }
  func.func @transform_3(%arg0: i32) -> (i32, i32) {
    %c0_i32 = arith.constant 0 : i32
    %c0_i32_0 = arith.constant 0 : i32
    %c0_i32_1 = arith.constant 0 : i32
    return %c0_i32, %c0_i32_0 : i32, i32
  }
  func.func @transform_4(%arg0: i32) -> (i32, i32) {
    %c0_i32 = arith.constant 0 : i32
    %c0_i32_0 = arith.constant 0 : i32
    %c0_i32_1 = arith.constant 0 : i32
    return %c0_i32, %c0_i32_0 : i32, i32
  }
  func.func @transform_5(%arg0: i32) -> (i32, i32, i32) {
    %c0_i32 = arith.constant 0 : i32
    %c0_i32_0 = arith.constant 0 : i32
    %c0_i32_1 = arith.constant 0 : i32
    return %arg0, %c0_i32, %c0_i32_0 : i32, i32, i32
  }
}

</mosaic_0001>

<llo_original>
// kernel: tpu_custom_call.1
$region0: #{tpu_custom_call.1}
  #allocation0 [shape = 'u32[]', space=smem, size = 0x4, offset = 0x4, fixed_abs, tag = 'smem constant byte address 0x4 - core index']
  #allocation1 [shape = 'u32[144,128]{1,0:T(1,128)}', space=vmem, size = 0x12000, scoped, tag = 'internal scratch']
  %s0 = inlined_call_operand.vmem [shape: f32[2,8,32], index: 0, kind: input, shape index: {}]
  %s1 = inlined_call_operand.vmem [shape: f32[160,32], index: 1, kind: input, shape index: {}]
  %s2 = inlined_call_operand.vmem [shape: f32[1,32], index: 2, kind: input, shape index: {}]
  %s3 = inlined_call_operand.vmem [shape: f32[1,32], index: 3, kind: input, shape index: {}]
  %s4 = inlined_call_operand.vmem [shape: f32[1,32], index: 4, kind: input, shape index: {}]
  %s5 = inlined_call_operand.hbm [shape: f32[2,8,32], index: 5, kind: output, shape index: {}]
  %s6 = sld [smem:[#allocation0]]
  $region53: #{tpu_custom_call.1} parent=0
    _
  %s8 = ssub.s32 1, %s6
  %s9 = scalar_select 0, %s8, %s6
  $region1: #{tpu_custom_call.1} parent=0
    #allocation2 [shape = 'u8[8192]{0}', space=vmem, size = 0x2000, scoped, tag = 'output window, operand 0']
    #allocation3 [shape = 's32[2]{0}', space=sflag, size = 0x8, scoped, tag = 'scoped memory for tpu_custom_call.1']
    %10 = vsyncpa [#allocation3], 0
    %s11 = scalar_lea.sflag [#allocation3], 1
    %12 = vsyncpa %s11, 0
    loop: start=0, step=1, limit=4
    $region2: #{tpu_custom_call.1} parent=1 // loop_pre_header
      _
    $region3: #{tpu_custom_call.1} parent=1 // loop_header
      %s14 = sphi 0, %s18
      %p15 = scmp.ge.s32.totalorder %s14, 4
      %s24 = sphi 0, %s26
      %s27 = sphi 0, %s24
      %s28 = sphi 0, %s27
      %s44 = sphi 0, %s28
      %s48 = sphi 0, %s48
      %s50 = sphi 0, %s48
      %s51 = sphi 0, %s50
      %s65 = sphi 0, %s51
      %s69 = sphi 0, %s69
      %s71 = sphi 0, %s69
      %s72 = sphi 0, %s71
      %s86 = sphi 0, %s72
      %s90 = sphi 0, %s90
      %s92 = sphi 0, %s90
      %s93 = sphi 0, %s92
      %s107 = sphi 0, %s93
      %s111 = sphi 0, %s111
      %s113 = sphi 0, %s111
      %s114 = sphi 0, %s113
      %s128 = sphi 0, %s114
      %s134 = sphi 0, %s136
      %s137 = sphi 0, %s134
      %s138 = sphi 0, %s137
      %s154 = sphi 0, %s138
    $region4: #{tpu_custom_call.1} parent=1 // loop_header_branch
      %17 = sbr.rel (%p15) target = $region8
    $region5: #{tpu_custom_call.1} parent=1 // loop_body
      %s19 = ssub.s32 %s14, 1
      %s20 = ssub.s32 %s14, 2
      %s21 = sadd.s32 %s14, 1
      %s22 = ssub.s32 %s14, %s21
      %p23 = scmp.eq.s32.totalorder %s22, 0
      %s25 = sadd.s32 %s24, 1
      %s26 = scalar_select %p23, %s24, %s25
      %p29 = pneg %p23
      %p30 = scmp.eq.s32.totalorder %s14, 1
      %p31 = por %p29, %p30
      %p32 = scmp.ne.s32.totalorder %s24, %s27
      %p33 = scmp.eq.s32.totalorder %s14, 0
      %p34 = por %p32, %p33
      %p35 = scmp.ne.s32.totalorder %s24, %s27
      %p36 = scmp.eq.s32.totalorder %s19, 1
      %p37 = por %p35, %p36
      %p38 = scmp.ne.s32.totalorder %s27, %s28
      %p39 = scmp.eq.s32.totalorder %s19, 0
      %p40 = por %p38, %p39
      %p41 = scmp.ne.s32.totalorder %s27, %s28
      %p42 = scmp.eq.s32.totalorder %s20, 1
      %p43 = por %p41, %p42
      %p45 = scmp.ne.s32.totalorder %s28, %s44
      %p46 = scmp.eq.s32.totalorder %s20, 0
      %p47 = por %p45, %p46
      %s49 = sadd.s32 %s48, 1
      %p52 = scmp.eq.s32.totalorder %s14, 1
      %p53 = scmp.ne.s32.totalorder %s48, %s50
      %p54 = scmp.eq.s32.totalorder %s14, 0
      %p55 = por %p53, %p54
      %p56 = scmp.ne.s32.totalorder %s48, %s50
      %p57 = scmp.eq.s32.totalorder %s19, 1
      %p58 = por %p56, %p57
      %p59 = scmp.ne.s32.totalorder %s50, %s51
      %p60 = scmp.eq.s32.totalorder %s19, 0
      %p61 = por %p59, %p60
      %p62 = scmp.ne.s32.totalorder %s50, %s51
      %p63 = scmp.eq.s32.totalorder %s20, 1
      %p64 = por %p62, %p63
      %p66 = scmp.ne.s32.totalorder %s51, %s65
      %p67 = scmp.eq.s32.totalorder %s20, 0
      %p68 = por %p66, %p67
      %s70 = sadd.s32 %s69, 1
      %p73 = scmp.eq.s32.totalorder %s14, 1
      %p74 = scmp.ne.s32.totalorder %s69, %s71
      %p75 = scmp.eq.s32.totalorder %s14, 0
      %p76 = por %p74, %p75
      %p77 = scmp.ne.s32.totalorder %s69, %s71
      %p78 = scmp.eq.s32.totalorder %s19, 1
      %p79 = por %p77, %p78
      %p80 = scmp.ne.s32.totalorder %s71, %s72
      %p81 = scmp.eq.s32.totalorder %s19, 0
      %p82 = por %p80, %p81
      %p83 = scmp.ne.s32.totalorder %s71, %s72
      %p84 = scmp.eq.s32.totalorder %s20, 1
      %p85 = por %p83, %p84
      %p87 = scmp.ne.s32.totalorder %s72, %s86
      %p88 = scmp.eq.s32.totalorder %s20, 0
      %p89 = por %p87, %p88
      %s91 = sadd.s32 %s90, 1
      %p94 = scmp.eq.s32.totalorder %s14, 1
      %p95 = scmp.ne.s32.totalorder %s90, %s92
      %p96 = scmp.eq.s32.totalorder %s14, 0
      %p97 = por %p95, %p96
      %p98 = scmp.ne.s32.totalorder %s90, %s92
      %p99 = scmp.eq.s32.totalorder %s19, 1
      %p100 = por %p98, %p99
      %p101 = scmp.ne.s32.totalorder %s92, %s93
      %p102 = scmp.eq.s32.totalorder %s19, 0
      %p103 = por %p101, %p102
      %p104 = scmp.ne.s32.totalorder %s92, %s93
      %p105 = scmp.eq.s32.totalorder %s20, 1
      %p106 = por %p104, %p105
      %p108 = scmp.ne.s32.totalorder %s93, %s107
      %p109 = scmp.eq.s32.totalorder %s20, 0
      %p110 = por %p108, %p109
      %s112 = sadd.s32 %s111, 1
      %p115 = scmp.eq.s32.totalorder %s14, 1
      %p116 = scmp.ne.s32.totalorder %s111, %s113
      %p117 = scmp.eq.s32.totalorder %s14, 0
      %p118 = por %p116, %p117
      %p119 = scmp.ne.s32.totalorder %s111, %s113
      %p120 = scmp.eq.s32.totalorder %s19, 1
      %p121 = por %p119, %p120
      %p122 = scmp.ne.s32.totalorder %s113, %s114
      %p123 = scmp.eq.s32.totalorder %s19, 0
      %p124 = por %p122, %p123
      %p125 = scmp.ne.s32.totalorder %s113, %s114
      %p126 = scmp.eq.s32.totalorder %s20, 1
      %p127 = por %p125, %p126
      %p129 = scmp.ne.s32.totalorder %s114, %s128
      %p130 = scmp.eq.s32.totalorder %s20, 0
      %p131 = por %p129, %p130
      %s132 = ssub.s32 %s14, %s21
      %p133 = scmp.eq.s32.totalorder %s132, 0
      %s135 = sadd.s32 %s134, 1
      %s136 = scalar_select %p133, %s134, %s135
      %p139 = pneg %p133
      %p140 = scmp.eq.s32.totalorder %s14, 1
      %p141 = por %p139, %p140
      %p142 = scmp.ne.s32.totalorder %s134, %s137
      %p143 = scmp.eq.s32.totalorder %s14, 0
      %p144 = por %p142, %p143
      %p145 = scmp.ne.s32.totalorder %s134, %s137
      %p146 = scmp.eq.s32.totalorder %s19, 1
      %p147 = por %p145, %p146
      %p148 = scmp.ne.s32.totalorder %s137, %s138
      %p149 = scmp.eq.s32.totalorder %s19, 0
      %p150 = por %p148, %p149
      %p151 = scmp.ne.s32.totalorder %s137, %s138
      %p152 = scmp.eq.s32.totalorder %s20, 1
      %p153 = por %p151, %p152
      %p155 = scmp.ne.s32.totalorder %s138, %s154
      %p156 = scmp.eq.s32.totalorder %s20, 0
      %p157 = por %p155, %p156
      %p158 = scmp.le.s32.totalorder 1, %s14
      %p159 = scmp.lt.s32.totalorder %s14, 3
      %p160 = pnand %p158, %p159
      %p161 = pneg %p160
      // Predicated region
      $region9: #{tpu_custom_call.1} parent=5 // pred_check
        _
      $region10: #{tpu_custom_call.1} parent=5 // pred_check_branch
        %163 = sbr.rel (%p160) target = $region12
      $region11: #{tpu_custom_call.1} parent=5 // pred_region
        %s164 = ssub.s32 %s14, 1
        // Predicated region
        $region13: #{tpu_custom_call.1} parent=11 // pred_check
          %p165 = pneg %p61
        $region14: #{tpu_custom_call.1} parent=11 // pred_check_branch
          %167 = sbr.rel (%p165) target = $region16
        $region15: #{tpu_custom_call.1} parent=11 // pred_region
          _
        $region16: #{tpu_custom_call.1} parent=11 // pred_fallthru
          _
        // Predicated region
        $region17: #{tpu_custom_call.1} parent=11 // pred_check
          %p168 = pneg %p82
        $region18: #{tpu_custom_call.1} parent=11 // pred_check_branch
          %170 = sbr.rel (%p168) target = $region20
        $region19: #{tpu_custom_call.1} parent=11 // pred_region
          _
        $region20: #{tpu_custom_call.1} parent=11 // pred_fallthru
          _
        // Predicated region
        $region21: #{tpu_custom_call.1} parent=11 // pred_check
          %p171 = pneg %p103
        $region22: #{tpu_custom_call.1} parent=11 // pred_check_branch
          %173 = sbr.rel (%p171) target = $region24
        $region23: #{tpu_custom_call.1} parent=11 // pred_region
          _
        $region24: #{tpu_custom_call.1} parent=11 // pred_fallthru
          _
        // Predicated region
        $region25: #{tpu_custom_call.1} parent=11 // pred_check
          %p174 = pneg %p124
        $region26: #{tpu_custom_call.1} parent=11 // pred_check_branch
          %176 = sbr.rel (%p174) target = $region28
        $region27: #{tpu_custom_call.1} parent=11 // pred_region
          _
        $region28: #{tpu_custom_call.1} parent=11 // pred_fallthru
          _
      $region12: #{tpu_custom_call.1} parent=5 // pred_fallthru
        _
      %p177 = scmp.lt.s32.totalorder %s14, 2
      // Predicated region
      $region29: #{tpu_custom_call.1} parent=5 // pred_check
        %p178 = pneg %p177
      $region30: #{tpu_custom_call.1} parent=5 // pred_check_branch
        %180 = sbr.rel (%p178) target = $region32
      $region31: #{tpu_custom_call.1} parent=5 // pred_region
        // Predicated region
        $region33: #{tpu_custom_call.1} parent=31 // pred_check
          %p181 = pneg %p34
        $region34: #{tpu_custom_call.1} parent=31 // pred_check_branch
          %183 = sbr.rel (%p181) target = $region36
        $region35: #{tpu_custom_call.1} parent=31 // pred_region
          %p184 = scmp.lt.s32.totalorder %s14, 1
          %s185 = scalar_select %p184, %s14, 1
          %s186 = smul.addr %s185, 8
          %s187 = scalar_lea.vmem %s0, %s186
        $region36: #{tpu_custom_call.1} parent=31 // pred_fallthru
          _
      $region32: #{tpu_custom_call.1} parent=5 // pred_fallthru
        _
      %p188 = scmp.le.s32.totalorder 1, %s14
      %p189 = scmp.lt.s32.totalorder %s14, 3
      %p190 = pnand %p188, %p189
      %p191 = pneg %p190
      // Predicated region
      $region37: #{tpu_custom_call.1} parent=5 // pred_check
        _
      $region38: #{tpu_custom_call.1} parent=5 // pred_check_branch
        %193 = sbr.rel (%p190) target = $region40
      $region39: #{tpu_custom_call.1} parent=5 // pred_region
        %s194 = ssub.s32 %s14, 1
        %p195 = scmp.lt.s32.totalorder %s19, 1
        %s196 = scalar_select %p195, %s19, 1
        %s197 = smul.addr %s196, 8
        %s198 = scalar_lea.vmem %s0, %s197
        %p199 = pneg %p40
        %p200 = pneg %p37
        %p201 = pneg %p61
        %p202 = pneg %p58
        %p203 = pneg %p82
        %p204 = pneg %p79
        %p205 = pneg %p103
        %p206 = pneg %p100
        %p207 = pneg %p124
        %p208 = pneg %p121
        %p209 = pneg %p150
        %p210 = pneg %p147
        %s211 = sand.u32 %s137, 1
        %s212 = scalar_lea.sflag [#allocation3], %s211
        %s213 = sand.u32 %s137, 1
        %s214 = smul.addr %s213, 8
        %s215 = scalar_lea.vmem [#allocation2], %s214
        %p216 = scmp.lt.s32.totalorder %s19, 1
        %s217 = scalar_select %p216, %s19, 1
        %s218 = smul.addr %s217, 8
        %s219 = scalar_lea.vmem %s0, %s218
        %v220 = vld [vmem:[%s219] sm:$0xff]
        %v222 = vrot.slane %v220, 6
        %vm224 = vcmask 1041408
        %v225 = vsel %vm224, 0.0, %v222
        %v226 = vsel %vm224, %v222, 0.0
        %vm229 = vcmask 1046528
        %v230 = vrot.slane %v225, 1
        %v231 = vrot.slane %v226, 1
        %v232 = vsel %vm229, %v230, %v231
        %233 = vrot.lane.b32.xlu0 %v232, 32
        %v234 = vpop.permute.xlu0 %233
        %vm236 = vcmask 1045504
        %v237 = vrot.slane %v225, 2
        %v238 = vrot.slane %v226, 2
        %v239 = vsel %vm236, %v237, %v238
        %240 = vrot.lane.b32.xlu0 %v239, 64
        %v241 = vpop.permute.xlu0 %240
        %vm243 = vcmask 1044480
        %v244 = vrot.slane %v225, 3
        %v245 = vrot.slane %v226, 3
        %v246 = vsel %vm243, %v244, %v245
        %247 = vrot.lane.b32.xlu0 %v246, 96
        %v248 = vpop.permute.xlu0 %247
        %vm250 = vcmask 1043456
        %v251 = vrot.slane %v225, 4
        %v252 = vrot.slane %v226, 4
        %v253 = vsel %vm250, %v251, %v252
        %vm254 = vcmask 261120
        %v255 = vsel %vm254, %v225, %v234
        %vm256 = vcmask 523264
        %v257 = vsel %vm256, %v255, %v241
        %vm258 = vcmask 785408
        %v259 = vsel %vm258, %v257, %v248
        %v260 = vld [vmem:[%s1] sm:$0xff]
        %v261 = vld [vmem:[%s1 + $0x8] sm:$0xff]
        %v262 = vld [vmem:[%s1 + $0x10] sm:$0xff]
        %v263 = vld [vmem:[%s1 + $0x18] sm:$0xff]
        %v264 = vld [vmem:[%s1 + $0x20] sm:$0xff]
        %v265 = vld [vmem:[%s1 + $0x28] sm:$0xff]
        %v266 = vld [vmem:[%s1 + $0x30] sm:$0xff]
        %v267 = vld [vmem:[%s1 + $0x38] sm:$0xff]
        %v268 = vld [vmem:[%s1 + $0x40] sm:$0xff]
        %v269 = vld [vmem:[%s1 + $0x48] sm:$0xff]
        %v270 = vld [vmem:[%s1 + $0x50] sm:$0xff]
        %v271 = vld [vmem:[%s1 + $0x58] sm:$0xff]
        %v272 = vld [vmem:[%s1 + $0x60] sm:$0xff]
        %v273 = vld [vmem:[%s1 + $0x68] sm:$0xff]
        %v274 = vld [vmem:[%s1 + $0x70] sm:$0xff]
        %v275 = vld [vmem:[%s1 + $0x78] sm:$0xff]
        %v276 = vld [vmem:[%s1 + $0x80] sm:$0xff]
        %v277 = vld [vmem:[%s1 + $0x88] sm:$0xff]
        %v278 = vld [vmem:[%s1 + $0x90] sm:$0xff]
        %v279 = vld [vmem:[%s1 + $0x98] sm:$0xff]
        %v280 = vld [vmem:[%s2] sm:$0x1]
        %v282 = vlaneseq
        %v283 = vshrl.u32 %v282, 7
        %v284 = vsub.s32 0, %v283
        %v285 = vrot.slane %v280, %v284
        %v287 = vsel %vm254, %v253, 0
        %289 = vmatprep.subr.mxu0 0.0
        %290 = vmatpush1.msra.mxu0 %v275
        %291 = vmatprep.subr.mxu0 0.0
        %292 = vmatpush1.msra.mxu0 %v274
        %293 = vmatprep.subr.mxu0 0.0
        %294 = vmatpush1.msra.mxu0 %v273
        %295 = vmatprep.subr.mxu0 0.0
        %296 = vmatpush1.msra.mxu0 %v272
        %297 = vmatprep.subr.mxu0 0.0
        %298 = vmatpush1.msra.mxu0 %v271
        %299 = vmatprep.subr.mxu0 0.0
        %300 = vmatpush1.msra.mxu0 %v270
        %301 = vmatprep.subr.mxu0 0.0
        %302 = vmatpush1.msra.mxu0 %v269
        %303 = vmatprep.subr.mxu0 0.0
        %304 = vmatpush1.msra.mxu0 %v268
        %305 = vmatprep.subr.mxu0 0.0
        %306 = vmatpush1.msra.mxu0 %v267
        %307 = vmatprep.subr.mxu0 0.0
        %308 = vmatpush1.msra.mxu0 %v266
        %309 = vmatprep.subr.mxu0 0.0
        %310 = vmatpush1.msra.mxu0 %v265
        %311 = vmatprep.subr.mxu0 0.0
        %312 = vmatpush1.msra.mxu0 %v264
        %313 = vmatprep.subr.mxu0 0.0
        %314 = vmatpush1.msra.mxu0 %v263
        %315 = vmatprep.subr.mxu0 0.0
        %316 = vmatpush1.msra.mxu0 %v262
        %317 = vmatprep.subr.mxu0 0.0
        %318 = vmatpush1.msra.mxu0 %v261
        %319 = vmatprep.subr.mxu0 0.0
        %320 = vmatpush1.msra.mxu0 %v260
        %321 = vmatprep.subr.mxu0 0.0
        %322 = vmatpush2.msra.mxu0 0.0
        %323 = vmatprep.subr.mxu0 0.0
        %324 = vmatpush2.msra.mxu0 0.0
        %325 = vmatprep.subr.mxu0 0.0
        %326 = vmatpush2.msra.mxu0 0.0
        %327 = vmatprep.subr.mxu0 0.0
        %328 = vmatpush2.msra.mxu0 0.0
        %329 = vmatprep.subr.mxu0 0.0
        %330 = vmatpush2.msra.mxu0 0.0
        %331 = vmatprep.subr.mxu0 0.0
        %332 = vmatpush2.msra.mxu0 0.0
        %333 = vmatprep.subr.mxu0 0.0
        %334 = vmatpush2.msra.mxu0 0.0
        %335 = vmatprep.subr.mxu0 0.0
        %336 = vmatpush2.msra.mxu0 0.0
        %337 = vmatprep.subr.mxu0 0.0
        %338 = vmatpush2.msra.mxu0 0.0
        %339 = vmatprep.subr.mxu0 0.0
        %340 = vmatpush2.msra.mxu0 0.0
        %341 = vmatprep.subr.mxu0 0.0
        %342 = vmatpush2.msra.mxu0 0.0
        %343 = vmatprep.subr.mxu0 0.0
        %344 = vmatpush2.msra.mxu0 0.0
        %345 = vmatprep.subr.mxu0 0.0
        %346 = vmatpush2.msra.mxu0 %v279
        %347 = vmatprep.subr.mxu0 0.0
        %348 = vmatpush2.msra.mxu0 %v278
        %349 = vmatprep.subr.mxu0 0.0
        %350 = vmatpush2.msra.mxu0 %v277
        %351 = vmatprep.subr.mxu0 0.0
        %352 = vmatpush2.msra.mxu0 %v276
        %353 = vmatprep.mubr.f32.mxu0 %v287
        %354 = vmatmul.mubr.f32.gmra.mxu0 %v259
        %v355 = vpop.f32.mrf.mxu0
        %v356 = vadd.f32 %v285, %v355
        %v357 = vpop.f32.mrf.mxu0
        %358 = vdwg.mxu0
        %v359 = vmul.f32 %v356, 0.5
        %v360 = vmul.f32 %v356, 0.044715
        %v361 = vmul.f32 %v360, %v356
        %v362 = vmul.f32 %v361, %v356
        %v363 = vadd.f32 %v356, %v362
        %v364 = vmul.f32 %v363, 0.7978846
        %v365 = vtanh.pop %v364
        %v366 = vadd.f32 %v365, 1.0
        %v367 = vmul.f32 %v359, %v366
        %v368 = vadd.f32 %v220, %v367
        %369 = vst.msk [vmem:[%s215] sm:$0xff] %vm254, %v368
        %s370 = sand.u32 %s137, 1
        %s371 = scalar_lea.sflag [#allocation3], %s370
        %s372 = sand.u32 %s137, 1
        %s373 = smul.addr %s372, 8
        %s374 = scalar_lea.vmem [#allocation2], %s373
        // Predicated region
        $region41: #{tpu_custom_call.1} parent=39 // pred_check
          %p375 = pneg %p147
        $region42: #{tpu_custom_call.1} parent=39 // pred_check_branch
          %377 = sbr.rel (%p375) target = $region44
        $region43: #{tpu_custom_call.1} parent=39 // pred_region
          %s379 = ssub.s32 128, 128
          %380 = vsyncadd %s371, %s379
          %s381 = smul.addr %s19, 128
          %s382 = scalar_lea.hbm %s5, %s381
          %s384 = sshll.u32 %s374, 4
          %s385 = int_to_ptr.vmem [resolvable:$true] %s384
          %387 = dma.vmem_to_hbm [thread:$0]  %s385, 128, %s382, %s371
        $region44: #{tpu_custom_call.1} parent=39 // pred_fallthru
          _
      $region40: #{tpu_custom_call.1} parent=5 // pred_fallthru
        _
      %p388 = scmp.le.s32.totalorder 2, %s14
      // Predicated region
      $region45: #{tpu_custom_call.1} parent=5 // pred_check
        %p389 = pneg %p388
      $region46: #{tpu_custom_call.1} parent=5 // pred_check_branch
        %391 = sbr.rel (%p389) target = $region48
      $region47: #{tpu_custom_call.1} parent=5 // pred_region
        %s392 = ssub.s32 %s14, 2
        // Predicated region
        $region49: #{tpu_custom_call.1} parent=47 // pred_check
          %p393 = pneg %p153
        $region50: #{tpu_custom_call.1} parent=47 // pred_check_branch
          %395 = sbr.rel (%p393) target = $region52
        $region51: #{tpu_custom_call.1} parent=47 // pred_region
          %s396 = sand.u32 %s138, 1
          %s397 = scalar_lea.sflag [#allocation3], %s396
          %s398 = sand.u32 %s138, 1
          %s399 = smul.addr %s398, 8
          %s400 = scalar_lea.vmem [#allocation2], %s399
          %401 = dma.done %s397, 128
        $region52: #{tpu_custom_call.1} parent=47 // pred_fallthru
          _
      $region48: #{tpu_custom_call.1} parent=5 // pred_fallthru
        _
    $region6: #{tpu_custom_call.1} parent=1 // loop_footer
      %s18 = sadd.s32 1, %s14
    $region7: #{tpu_custom_call.1} parent=1 // loop_footer_branch
      %13 = sbr.rel target = $region3
    $region8: #{tpu_custom_call.1} parent=1 // loop_exit
      _
    %402 = vsyncpa [#allocation3], 1
    %s403 = scalar_lea.sflag [#allocation3], 1
    %404 = vsyncpa %s403, 1

</llo_original>
